<compile_context>
chip_gen: v7x
topology: tpu7x:2x2x1
jax: 0.10.0
libtpu: 0.0.40
codegen_flags: <defaults>
</compile_context>

<pallas_src>
import jax
import jax.numpy as jnp
from jax import lax
from jax.experimental import pallas as pl
from jax.experimental.pallas import tpu as pltpu


def head_kernel(x_ref, m_ref, w1_ref, b1_ref, g1_ref, be1_ref,
                w2_ref, b2_ref, g2_ref, be2_ref, fcw_ref, fcb_ref, o_ref):
    Bt, S, H = x_ref.shape

    # --- AttentionPooling MLP: Linear(H,H) -> LayerNorm(H) -> GELU ----------
    # Flatten (Bt, S, H) -> (Bt*S, H) so a single MXU matmul per grid step
    # sees Bt*S rows (fills the 128/256-wide systolic M dimension).
    x = x_ref[...]                                        # bf16 MXU operand
    x2 = x.reshape(Bt * S, H)
    h = jnp.dot(x2, w1_ref[...], preferred_element_type=jnp.float32)
    h = h + b1_ref[...]                                   # f32 from here on
    mu = jnp.mean(h, axis=-1, keepdims=True)
    var = jnp.mean(jnp.square(h - mu), axis=-1, keepdims=True)
    h = (h - mu) * lax.rsqrt(var + 1e-5) * g1_ref[...] + be1_ref[...]
    # exact (erf) GELU, matching torch.nn.GELU default
    h = 0.5 * h * (1.0 + lax.erf(h * 0.7071067811865476))

    # --- attention scores: (H,1) GEMV done as a VPU lane reduction ----------
    b2 = b2_ref[0]                                        # scalar from SMEM
    sc = jnp.sum(h * w2_ref[...], axis=-1, keepdims=True) + b2   # (Bt*S, 1)
    sc = sc.reshape(Bt, S, 1)
    sc = jnp.where(m_ref[...] > 0.0, sc, -1e30)           # finite sentinel

    # masked softmax over the sequence axis
    smax = jnp.max(sc, axis=1, keepdims=True)
    e = jnp.exp(sc - smax)
    w = e / jnp.sum(e, axis=1, keepdims=True)             # (Bt, S, 1)

    pooled = jnp.sum(w * x.astype(jnp.float32), axis=1)   # (Bt, H)

    # --- final LayerNorm -----------------------------------------------------
    mu2 = jnp.mean(pooled, axis=-1, keepdims=True)
    var2 = jnp.mean(jnp.square(pooled - mu2), axis=-1, keepdims=True)
    pooled = (pooled - mu2) * lax.rsqrt(var2 + 1e-5) * g2_ref[...] + be2_ref[...]

    # --- fc head: (Bt,H)x(H,C), tiny C -> VPU multiply + lane reduce --------
    logits = jnp.sum(pooled[:, None, :] * fcw_ref[...][None, :, :], axis=-1)
    logits = logits + fcb_ref[...]                        # (Bt, C)
    o_ref[...] = logits.astype(o_ref.dtype)


def _choose_bt(B, S, H, itemsize, target_rows=256, act_budget=8 << 20):
    """Rows-per-step so Bt*S fills the MXU; Bt multiple of 8 (clean (Bt,C)
    output block); bounded so the double-buffered activation tile stays small
    relative to v7x's 64 MiB VMEM."""
    bt = -(-target_rows // S)            # ceil(target_rows / S)
    bt = -(-bt // 8) * 8                 # round up to a multiple of 8
    while bt > 8 and 2 * bt * S * H * itemsize > act_budget:
        bt -= 8
    if B <= bt:
        return B                         # single full-batch tile (valid block)
    return bt


def custom_model_head(last_state, attention_mask, p, *, matmul_dtype=jnp.bfloat16):
    B, S, H = last_state.shape
    C = p["fc_w"].shape[1]
    mm_itemsize = jnp.dtype(matmul_dtype).itemsize

    bt = _choose_bt(B, S, H, mm_itemsize)
    Bp = -(-B // bt) * bt                # pad batch to a multiple of bt
    grid = (Bp // bt,)

    x = last_state.astype(matmul_dtype)                   # bf16 MXU operand
    mask3 = attention_mask.astype(jnp.float32).reshape(B, S, 1)
    if Bp > B:
        x = jnp.pad(x, ((0, Bp - B), (0, 0), (0, 0)))
        mask3 = jnp.pad(mask3, ((0, Bp - B), (0, 0), (0, 0)))   # padded rows fully masked

    w1 = p["att_w1"].astype(matmul_dtype)                       # (H, H)
    w2_row = p["att_w2"].reshape(1, H).astype(jnp.float32)      # (1, H)
    b2 = p["att_b2"].reshape(1).astype(jnp.float32)             # scalar -> SMEM
    fcw_t = p["fc_w"].T.astype(jnp.float32)                     # (C, H)

    def full(shape):
        return pl.BlockSpec(shape, lambda b, _n=len(shape): (0,) * _n)

    # conservative VMEM budget (double-buffered tiles + resident params +
    # f32 intermediates), clamped well under v7x's 64 MiB physical VMEM.
    est = (2 * (bt * S * H * mm_itemsize + bt * S * 4 + bt * C * 4)
           + 2 * (H * H * mm_itemsize + 6 * H * 4 + C * H * 4 + C * 4)
           + 4 * bt * S * H * 4)
    vmem_limit = int(min(max(2 * est, 32 << 20), 48 << 20))

    out = pl.pallas_call(
        head_kernel,
        out_shape=jax.ShapeDtypeStruct((Bp, C), jnp.float32),
        grid=grid,
        in_specs=[
            pl.BlockSpec((bt, S, H), lambda b: (b, 0, 0)),      # hidden states
            pl.BlockSpec((bt, S, 1), lambda b: (b, 0, 0)),      # attention mask
            full((H, H)), full((1, H)),                         # pool Linear1 w, b
            full((1, H)), full((1, H)),                         # pool LayerNorm g, b
            full((1, H)),                                       # pool Linear2 w (row)
            pl.BlockSpec(memory_space=pltpu.MemorySpace.SMEM),  # pool Linear2 b (scalar)
            full((1, H)), full((1, H)),                         # final LayerNorm g, b
            full((C, H)), full((1, C)),                         # fc w^T, b
        ],
        out_specs=pl.BlockSpec((bt, C), lambda b: (b, 0)),      # lane-dense logits
        compiler_params=pltpu.CompilerParams(
            dimension_semantics=("parallel",),
            vmem_limit_bytes=vmem_limit),
    )(x, mask3,
      w1, p["att_b1"], p["att_g"], p["att_be"],
      w2_row, b2, p["ln_g"], p["ln_b"],
      fcw_t, p["fc_b"])
    return out[:B].squeeze()             # matches torch's .squeeze()


def reference(last_state, mask, p, *, matmul_dtype=jnp.bfloat16):
    # Mirrors the kernel's mixed-precision choice (bf16 MXU operands, f32 math).
    x = last_state.astype(matmul_dtype).astype(jnp.float32)
    w1 = p["att_w1"].astype(matmul_dtype).astype(jnp.float32)
    h = x @ w1 + p["att_b1"]
    mu = h.mean(-1, keepdims=True)
    var = jnp.square(h - mu).mean(-1, keepdims=True)
    h = (h - mu) / jnp.sqrt(var + 1e-5) * p["att_g"] + p["att_be"]
    h = 0.5 * h * (1.0 + lax.erf(h * 0.7071067811865476))
    s = h @ p["att_w2"] + p["att_b2"]                      # (B, S, 1)
    s = jnp.where(mask[..., None] > 0, s, -1e30)
    w = jax.nn.softmax(s, axis=1)
    pooled = (w * x).sum(axis=1)                           # (B, H)
    mu = pooled.mean(-1, keepdims=True)
    var = jnp.square(pooled - mu).mean(-1, keepdims=True)
    pooled = (pooled - mu) / jnp.sqrt(var + 1e-5) * p["ln_g"] + p["ln_b"]
    return (pooled @ p["fc_w"] + p["fc_b"]).squeeze()


if __name__ == "__main__":
    B, S, H, C = 2, 8, 32, 1   # num_classes = 1 -> squeeze gives shape (B,)
    std = 0.02                 # initializer_range

    key = jax.random.PRNGKey(0)
    ks = jax.random.split(key, 5)

    params = dict(
        att_w1=jax.random.normal(ks[0], (H, H), jnp.float32) * std,
        att_b1=jnp.zeros((1, H), jnp.float32),
        att_g=jnp.ones((1, H), jnp.float32),
        att_be=jnp.zeros((1, H), jnp.float32),
        att_w2=jax.random.normal(ks[1], (H, 1), jnp.float32) * std,
        att_b2=jnp.zeros((1, 1), jnp.float32),
        ln_g=jnp.ones((1, H), jnp.float32),
        ln_b=jnp.zeros((1, H), jnp.float32),
        fc_w=jax.random.normal(ks[2], (H, C), jnp.float32) * std,
        fc_b=jnp.zeros((1, C), jnp.float32),
    )

    # synthetic backbone output (stand-in for AutoModel(**inputs)[0])
    last_state = jax.random.normal(ks[3], (B, S, H), jnp.float32)
    attention_mask = jnp.array(
        [[1] * S, [1] * (S - 3) + [0] * 3], dtype=jnp.int32)

    out = custom_model_head(last_state, attention_mask, params)
    out = jax.block_until_ready(out)

    ref = reference(last_state, attention_mask, params)
    assert out.shape == ref.shape, (out.shape, ref.shape)
    assert jnp.allclose(out, ref, atol=2e-3, rtol=2e-3), (out, ref)

    print("KERNEL_OK")
</pallas_src>

<mosaic_0001>
module attributes {stable_mosaic.version = 11 : i64} {
  func.func @head_kernel(%arg0: i32, %arg1: memref<2x8x32xbf16, #tpu.memory_space<vmem>>, %arg2: memref<2x8x1xf32, #tpu.memory_space<vmem>>, %arg3: memref<32x32xbf16, #tpu.memory_space<vmem>>, %arg4: memref<1x32xf32, #tpu.memory_space<vmem>>, %arg5: memref<1x32xf32, #tpu.memory_space<vmem>>, %arg6: memref<1x32xf32, #tpu.memory_space<vmem>>, %arg7: memref<1x32xf32, #tpu.memory_space<vmem>>, %arg8: memref<1xf32, #tpu.memory_space<smem>>, %arg9: memref<1x32xf32, #tpu.memory_space<vmem>>, %arg10: memref<1x32xf32, #tpu.memory_space<vmem>>, %arg11: memref<1x32xf32, #tpu.memory_space<vmem>>, %arg12: memref<1x1xf32, #tpu.memory_space<vmem>>, %arg13: memref<2x1xf32, #tpu.memory_space<vmem>>) attributes {dimension_semantics = [#tpu.dimension_semantics<parallel>], iteration_bounds = array<i64: 1>, scalar_prefetch = 0 : i64, scratch_operands = 0 : i64, tpu.core_type = #tpu.core_type<tc>, window_params = [{transform_indices = @transform_0, window_bounds = array<i64: 2, 8, 32>}, {transform_indices = @transform_1, window_bounds = array<i64: 2, 8, 1>}, {pipeline_mode = #tpu.pipeline_mode<synchronous>, transform_indices = @transform_2, window_bounds = array<i64: 32, 32>}, {pipeline_mode = #tpu.pipeline_mode<synchronous>, transform_indices = @transform_3, window_bounds = array<i64: 1, 32>}, {pipeline_mode = #tpu.pipeline_mode<synchronous>, transform_indices = @transform_4, window_bounds = array<i64: 1, 32>}, {pipeline_mode = #tpu.pipeline_mode<synchronous>, transform_indices = @transform_5, window_bounds = array<i64: 1, 32>}, {pipeline_mode = #tpu.pipeline_mode<synchronous>, transform_indices = @transform_6, window_bounds = array<i64: 1, 32>}, {transform_indices = @transform_7, window_bounds = array<i64: 1>}, {pipeline_mode = #tpu.pipeline_mode<synchronous>, transform_indices = @transform_8, window_bounds = array<i64: 1, 32>}, {pipeline_mode = #tpu.pipeline_mode<synchronous>, transform_indices = @transform_9, window_bounds = array<i64: 1, 32>}, {pipeline_mode = #tpu.pipeline_mode<synchronous>, transform_indices = @transform_10, window_bounds = array<i64: 1, 32>}, {pipeline_mode = #tpu.pipeline_mode<synchronous>, transform_indices = @transform_11, window_bounds = array<i64: 1, 1>}, {transform_indices = @transform_12, window_bounds = array<i64: 2, 1>}]} {
    %c0 = arith.constant 0 : index
    %c0_0 = arith.constant 0 : index
    %c0_1 = arith.constant 0 : index
    %0 = vector.load %arg1[%c0, %c0_0, %c0_1] : memref<2x8x32xbf16, #tpu.memory_space<vmem>>, vector<2x8x32xbf16>
    %1 = vector.shape_cast %0 : vector<2x8x32xbf16> to vector<16x32xbf16>
    %c0_2 = arith.constant 0 : index
    %c0_3 = arith.constant 0 : index
    %2 = vector.load %arg3[%c0_2, %c0_3] : memref<32x32xbf16, #tpu.memory_space<vmem>>, vector<32x32xbf16>
    %cst = arith.constant dense<0.000000e+00> : vector<16x32xf32>
    %3 = tpu.matmul %1, %2, %cst {dimension_numbers = #tpu.dot_dimension_numbers<[1], [0], [0], [1], [0, 0, 1, 1], [], []>} : vector<16x32xbf16>, vector<32x32xbf16>, vector<16x32xf32> -> vector<16x32xf32>
    %c0_4 = arith.constant 0 : index
    %c0_5 = arith.constant 0 : index
    %4 = vector.load %arg4[%c0_4, %c0_5] : memref<1x32xf32, #tpu.memory_space<vmem>>, vector<1x32xf32>
    %5 = vector.broadcast %4 : vector<1x32xf32> to vector<16x32xf32>
    %6 = arith.addf %3, %5 : vector<16x32xf32>
    %cst_6 = arith.constant dense<0.000000e+00> : vector<16xf32>
    %7 = vector.multi_reduction <add>, %6, %cst_6 [1] : vector<16x32xf32> to vector<16xf32>
    %8 = vector.shape_cast %7 : vector<16xf32> to vector<16x1xf32>
    %cst_7 = arith.constant 3.200000e+01 : f32
    %9 = vector.broadcast %cst_7 : f32 to vector<16x1xf32>
    %10 = arith.divf %8, %9 : vector<16x1xf32>
    %11 = vector.broadcast %10 : vector<16x1xf32> to vector<16x32xf32>
    %12 = arith.subf %6, %11 : vector<16x32xf32>
    %13 = arith.mulf %12, %12 : vector<16x32xf32>
    %cst_8 = arith.constant dense<0.000000e+00> : vector<16xf32>
    %14 = vector.multi_reduction <add>, %13, %cst_8 [1] : vector<16x32xf32> to vector<16xf32>
    %15 = vector.shape_cast %14 : vector<16xf32> to vector<16x1xf32>
    %cst_9 = arith.constant 3.200000e+01 : f32
    %16 = vector.broadcast %cst_9 : f32 to vector<16x1xf32>
    %17 = arith.divf %15, %16 : vector<16x1xf32>
    %18 = vector.broadcast %10 : vector<16x1xf32> to vector<16x32xf32>
    %19 = arith.subf %6, %18 : vector<16x32xf32>
    %cst_10 = arith.constant 9.99999974E-6 : f32
    %20 = vector.broadcast %cst_10 : f32 to vector<16x1xf32>
    %21 = arith.addf %17, %20 : vector<16x1xf32>
    %22 = math.rsqrt %21 : vector<16x1xf32>
    %23 = vector.broadcast %22 : vector<16x1xf32> to vector<16x32xf32>
    %24 = arith.mulf %19, %23 : vector<16x32xf32>
    %c0_11 = arith.constant 0 : index
    %c0_12 = arith.constant 0 : index
    %25 = vector.load %arg5[%c0_11, %c0_12] : memref<1x32xf32, #tpu.memory_space<vmem>>, vector<1x32xf32>
    %26 = vector.broadcast %25 : vector<1x32xf32> to vector<16x32xf32>
    %27 = arith.mulf %24, %26 : vector<16x32xf32>
    %c0_13 = arith.constant 0 : index
    %c0_14 = arith.constant 0 : index
    %28 = vector.load %arg6[%c0_13, %c0_14] : memref<1x32xf32, #tpu.memory_space<vmem>>, vector<1x32xf32>
    %29 = vector.broadcast %28 : vector<1x32xf32> to vector<16x32xf32>
    %30 = arith.addf %27, %29 : vector<16x32xf32>
    %cst_15 = arith.constant 5.000000e-01 : f32
    %31 = vector.broadcast %cst_15 : f32 to vector<16x32xf32>
    %32 = arith.mulf %31, %30 : vector<16x32xf32>
    %cst_16 = arith.constant 0.707106769 : f32
    %33 = vector.broadcast %cst_16 : f32 to vector<16x32xf32>
    %34 = arith.mulf %30, %33 : vector<16x32xf32>
    %35 = math.erf %34 : vector<16x32xf32>
    %cst_17 = arith.constant 1.000000e+00 : f32
    %36 = vector.broadcast %cst_17 : f32 to vector<16x32xf32>
    %37 = arith.addf %36, %35 : vector<16x32xf32>
    %38 = arith.mulf %32, %37 : vector<16x32xf32>
    %c0_18 = arith.constant 0 : index
    %39 = memref.load %arg8[%c0_18] : memref<1xf32, #tpu.memory_space<smem>>
    %c0_19 = arith.constant 0 : index
    %c0_20 = arith.constant 0 : index
    %40 = vector.load %arg7[%c0_19, %c0_20] : memref<1x32xf32, #tpu.memory_space<vmem>>, vector<1x32xf32>
    %41 = vector.broadcast %40 : vector<1x32xf32> to vector<16x32xf32>
    %42 = arith.mulf %38, %41 : vector<16x32xf32>
    %cst_21 = arith.constant dense<0.000000e+00> : vector<16xf32>
    %43 = vector.multi_reduction <add>, %42, %cst_21 [1] : vector<16x32xf32> to vector<16xf32>
    %44 = vector.shape_cast %43 : vector<16xf32> to vector<16x1xf32>
    %45 = vector.broadcast %39 : f32 to vector<16x1xf32>
    %46 = arith.addf %44, %45 : vector<16x1xf32>
    %47 = vector.shape_cast %46 : vector<16x1xf32> to vector<2x8x1xf32>
    %c0_22 = arith.constant 0 : index
    %c0_23 = arith.constant 0 : index
    %c0_24 = arith.constant 0 : index
    %48 = vector.load %arg2[%c0_22, %c0_23, %c0_24] : memref<2x8x1xf32, #tpu.memory_space<vmem>>, vector<2x8x1xf32>
    %cst_25 = arith.constant 0.000000e+00 : f32
    %49 = vector.broadcast %cst_25 : f32 to vector<2x8x1xf32>
    %50 = arith.cmpf ogt, %48, %49 : vector<2x8x1xf32>
    %cst_26 = arith.constant -1.000000e+30 : f32
    %51 = vector.broadcast %cst_26 : f32 to vector<2x8x1xf32>
    %52 = arith.select %50, %47, %51 : vector<2x8x1xi1>, vector<2x8x1xf32>
    %cst_27 = arith.constant dense<0xFF800000> : vector<2x1xf32>
    %53 = vector.multi_reduction <maximumf>, %52, %cst_27 [1] : vector<2x8x1xf32> to vector<2x1xf32>
    %54 = vector.shape_cast %53 : vector<2x1xf32> to vector<2x1x1xf32>
    %55 = vector.broadcast %54 : vector<2x1x1xf32> to vector<2x8x1xf32>
    %56 = arith.subf %52, %55 : vector<2x8x1xf32>
    %57 = math.exp %56 : vector<2x8x1xf32>
    %cst_28 = arith.constant dense<0.000000e+00> : vector<2x1xf32>
    %58 = vector.multi_reduction <add>, %57, %cst_28 [1] : vector<2x8x1xf32> to vector<2x1xf32>
    %59 = vector.shape_cast %58 : vector<2x1xf32> to vector<2x1x1xf32>
    %60 = vector.broadcast %59 : vector<2x1x1xf32> to vector<2x8x1xf32>
    %61 = arith.divf %57, %60 : vector<2x8x1xf32>
    %62 = arith.extf %0 : vector<2x8x32xbf16> to vector<2x8x32xf32>
    %63 = vector.broadcast %61 : vector<2x8x1xf32> to vector<2x8x32xf32>
    %64 = arith.mulf %63, %62 : vector<2x8x32xf32>
    %cst_29 = arith.constant dense<0.000000e+00> : vector<2x32xf32>
    %65 = vector.multi_reduction <add>, %64, %cst_29 [1] : vector<2x8x32xf32> to vector<2x32xf32>
    %cst_30 = arith.constant dense<0.000000e+00> : vector<2xf32>
    %66 = vector.multi_reduction <add>, %65, %cst_30 [1] : vector<2x32xf32> to vector<2xf32>
    %67 = vector.shape_cast %66 : vector<2xf32> to vector<2x1xf32>
    %cst_31 = arith.constant 3.200000e+01 : f32
    %68 = vector.broadcast %cst_31 : f32 to vector<2x1xf32>
    %69 = arith.divf %67, %68 : vector<2x1xf32>
    %70 = vector.broadcast %69 : vector<2x1xf32> to vector<2x32xf32>
    %71 = arith.subf %65, %70 : vector<2x32xf32>
    %72 = arith.mulf %71, %71 : vector<2x32xf32>
    %cst_32 = arith.constant dense<0.000000e+00> : vector<2xf32>
    %73 = vector.multi_reduction <add>, %72, %cst_32 [1] : vector<2x32xf32> to vector<2xf32>
    %74 = vector.shape_cast %73 : vector<2xf32> to vector<2x1xf32>
    %cst_33 = arith.constant 3.200000e+01 : f32
    %75 = vector.broadcast %cst_33 : f32 to vector<2x1xf32>
    %76 = arith.divf %74, %75 : vector<2x1xf32>
    %77 = vector.broadcast %69 : vector<2x1xf32> to vector<2x32xf32>
    %78 = arith.subf %65, %77 : vector<2x32xf32>
    %cst_34 = arith.constant 9.99999974E-6 : f32
    %79 = vector.broadcast %cst_34 : f32 to vector<2x1xf32>
    %80 = arith.addf %76, %79 : vector<2x1xf32>
    %81 = math.rsqrt %80 : vector<2x1xf32>
    %82 = vector.broadcast %81 : vector<2x1xf32> to vector<2x32xf32>
    %83 = arith.mulf %78, %82 : vector<2x32xf32>
    %c0_35 = arith.constant 0 : index
    %c0_36 = arith.constant 0 : index
    %84 = vector.load %arg9[%c0_35, %c0_36] : memref<1x32xf32, #tpu.memory_space<vmem>>, vector<1x32xf32>
    %85 = vector.broadcast %84 : vector<1x32xf32> to vector<2x32xf32>
    %86 = arith.mulf %83, %85 : vector<2x32xf32>
    %c0_37 = arith.constant 0 : index
    %c0_38 = arith.constant 0 : index
    %87 = vector.load %arg10[%c0_37, %c0_38] : memref<1x32xf32, #tpu.memory_space<vmem>>, vector<1x32xf32>
    %88 = vector.broadcast %87 : vector<1x32xf32> to vector<2x32xf32>
    %89 = arith.addf %86, %88 : vector<2x32xf32>
    %90 = vector.shape_cast %89 : vector<2x32xf32> to vector<2x1x32xf32>
    %c0_39 = arith.constant 0 : index
    %c0_40 = arith.constant 0 : index
    %91 = vector.load %arg11[%c0_39, %c0_40] : memref<1x32xf32, #tpu.memory_space<vmem>>, vector<1x32xf32>
    %92 = vector.shape_cast %91 : vector<1x32xf32> to vector<1x1x32xf32>
    %93 = vector.broadcast %92 : vector<1x1x32xf32> to vector<2x1x32xf32>
    %94 = arith.mulf %90, %93 : vector<2x1x32xf32>
    %cst_41 = arith.constant dense<0.000000e+00> : vector<2x1xf32>
    %95 = vector.multi_reduction <add>, %94, %cst_41 [2] : vector<2x1x32xf32> to vector<2x1xf32>
    %c0_42 = arith.constant 0 : index
    %c0_43 = arith.constant 0 : index
    %96 = vector.load %arg12[%c0_42, %c0_43] : memref<1x1xf32, #tpu.memory_space<vmem>>, vector<1x1xf32>
    %97 = vector.broadcast %96 : vector<1x1xf32> to vector<2x1xf32>
    %98 = arith.addf %95, %97 : vector<2x1xf32>
    %c0_44 = arith.constant 0 : index
    %c0_45 = arith.constant 0 : index
    %99 = vector.load %arg13[%c0_44, %c0_45] : memref<2x1xf32, #tpu.memory_space<vmem>>, vector<2x1xf32>
    tpu.vector_store %arg13[%c0_44, %c0_45], %98 {strides = array<i32>} : memref<2x1xf32, #tpu.memory_space<vmem>>, vector<2x1xf32>,
    return
  }
  func.func @transform_0(%arg0: i32) -> (i32, i32, i32) {
    %c0_i32 = arith.constant 0 : i32
    %c0_i32_0 = arith.constant 0 : i32
    %c0_i32_1 = arith.constant 0 : i32
    return %arg0, %c0_i32, %c0_i32_0 : i32, i32, i32
  }
  func.func @transform_1(%arg0: i32) -> (i32, i32, i32) {
    %c0_i32 = arith.constant 0 : i32
    %c0_i32_0 = arith.constant 0 : i32
    %c0_i32_1 = arith.constant 0 : i32
    return %arg0, %c0_i32, %c0_i32_0 : i32, i32, i32
  }
  func.func @transform_2(%arg0: i32) -> (i32, i32) {
    %c0_i32 = arith.constant 0 : i32
    %c0_i32_0 = arith.constant 0 : i32
    %c0_i32_1 = arith.constant 0 : i32
    return %c0_i32, %c0_i32_0 : i32, i32
  }
  func.func @transform_3(%arg0: i32) -> (i32, i32) {
    %c0_i32 = arith.constant 0 : i32
    %c0_i32_0 = arith.constant 0 : i32
    %c0_i32_1 = arith.constant 0 : i32
    return %c0_i32, %c0_i32_0 : i32, i32
  }
  func.func @transform_4(%arg0: i32) -> (i32, i32) {
    %c0_i32 = arith.constant 0 : i32
    %c0_i32_0 = arith.constant 0 : i32
    %c0_i32_1 = arith.constant 0 : i32
    return %c0_i32, %c0_i32_0 : i32, i32
  }
  func.func @transform_5(%arg0: i32) -> (i32, i32) {
    %c0_i32 = arith.constant 0 : i32
    %c0_i32_0 = arith.constant 0 : i32
    %c0_i32_1 = arith.constant 0 : i32
    return %c0_i32, %c0_i32_0 : i32, i32
  }
  func.func @transform_6(%arg0: i32) -> (i32, i32) {
    %c0_i32 = arith.constant 0 : i32
    %c0_i32_0 = arith.constant 0 : i32
    %c0_i32_1 = arith.constant 0 : i32
    return %c0_i32, %c0_i32_0 : i32, i32
  }
  func.func @transform_7(%arg0: i32) -> i32 {
    %c0_i32 = arith.constant 0 : i32
    %c0_i32_0 = arith.constant 0 : i32
    return %c0_i32 : i32
  }
  func.func @transform_8(%arg0: i32) -> (i32, i32) {
    %c0_i32 = arith.constant 0 : i32
    %c0_i32_0 = arith.constant 0 : i32
    %c0_i32_1 = arith.constant 0 : i32
    return %c0_i32, %c0_i32_0 : i32, i32
  }
  func.func @transform_9(%arg0: i32) -> (i32, i32) {
    %c0_i32 = arith.constant 0 : i32
    %c0_i32_0 = arith.constant 0 : i32
    %c0_i32_1 = arith.constant 0 : i32
    return %c0_i32, %c0_i32_0 : i32, i32
  }
  func.func @transform_10(%arg0: i32) -> (i32, i32) {
    %c0_i32 = arith.constant 0 : i32
    %c0_i32_0 = arith.constant 0 : i32
    %c0_i32_1 = arith.constant 0 : i32
    return %c0_i32, %c0_i32_0 : i32, i32
  }
  func.func @transform_11(%arg0: i32) -> (i32, i32) {
    %c0_i32 = arith.constant 0 : i32
    %c0_i32_0 = arith.constant 0 : i32
    %c0_i32_1 = arith.constant 0 : i32
    return %c0_i32, %c0_i32_0 : i32, i32
  }
  func.func @transform_12(%arg0: i32) -> (i32, i32) {
    %c0_i32 = arith.constant 0 : i32
    %c0_i32_0 = arith.constant 0 : i32
    return %arg0, %c0_i32 : i32, i32
  }
}

</mosaic_0001>

<llo_original>
// kernel: tpu_custom_call.1
$region0: #{tpu_custom_call.1}
  #allocation0 [shape = 'u32[]', space=smem, size = 0x4, offset = 0x4, fixed_abs, tag = 'smem constant byte address 0x4 - core index']
  #allocation1 [shape = 'u32[144,128]{1,0:T(1,128)}', space=vmem, size = 0x12000, scoped, tag = 'internal scratch']
  #allocation2 [shape = 'f32[1]{0:T(128)S(6)}', space=smem, size = 0x200, scoped, tag = 'scoped memory for tpu_custom_call.1']
  #allocation3 [shape = 'f32[1,1]{1,0:T(1,128)S(1)}', space=vmem, size = 0x200, scoped, tag = 'scoped memory for tpu_custom_call.1']
  %s0 = inlined_call_operand.vmem [shape: bf16[2,8,32], index: 0, kind: input, shape index: {}]
  %s1 = inlined_call_operand.vmem [shape: f32[2,8,1], index: 1, kind: input, shape index: {}]
  %s2 = inlined_call_operand.vmem [shape: bf16[32,32], index: 2, kind: input, shape index: {}]
  %s3 = inlined_call_operand.vmem [shape: f32[1,32], index: 3, kind: input, shape index: {}]
  %s4 = inlined_call_operand.vmem [shape: f32[1,32], index: 4, kind: input, shape index: {}]
  %s5 = inlined_call_operand.vmem [shape: f32[1,32], index: 5, kind: input, shape index: {}]
  %s6 = inlined_call_operand.vmem [shape: f32[1,32], index: 6, kind: input, shape index: {}]
  %s7 = inlined_call_operand.<no memory space> [shape: f32[1], index: 7, kind: input, shape index: {}]
  %s8 = inlined_call_operand.vmem [shape: f32[1,32], index: 8, kind: input, shape index: {}]
  %s9 = inlined_call_operand.vmem [shape: f32[1,32], index: 9, kind: input, shape index: {}]
  %s10 = inlined_call_operand.vmem [shape: f32[1,32], index: 10, kind: input, shape index: {}]
  %s11 = inlined_call_operand.<no memory space> [shape: f32[1,1], index: 11, kind: input, shape index: {}]
  %s12 = inlined_call_operand.vmem [shape: f32[2,1], index: 12, kind: output, shape index: {}]
  %s13 = sld [smem:[#allocation0]]
  $region58: #{tpu_custom_call.1} parent=0
    _
  %s15 = ssub.s32 1, %s13
  %s16 = scalar_select 0, %s15, %s13
  %17 = sst [smem:[#allocation2]] %s7
  %v18 = vstv %s11
  %19 = vst [vmem:[#allocation3] sm:$0x1] %v18
  // Predicated region
  $region2: #{tpu_custom_call.1} parent=0 // pred_check
    _
  $region3: #{tpu_custom_call.1} parent=0 // pred_check_branch
    %21 = sbr.rel (0) target = $region5
  $region4: #{tpu_custom_call.1} parent=0 // pred_region
    _
  $region5: #{tpu_custom_call.1} parent=0 // pred_fallthru
    _
  // Predicated region
  $region6: #{tpu_custom_call.1} parent=0 // pred_check
    _
  $region7: #{tpu_custom_call.1} parent=0 // pred_check_branch
    %23 = sbr.rel (0) target = $region9
  $region8: #{tpu_custom_call.1} parent=0 // pred_region
    _
  $region9: #{tpu_custom_call.1} parent=0 // pred_fallthru
    _
  // Predicated region
  $region10: #{tpu_custom_call.1} parent=0 // pred_check
    _
  $region11: #{tpu_custom_call.1} parent=0 // pred_check_branch
    %25 = sbr.rel (0) target = $region13
  $region12: #{tpu_custom_call.1} parent=0 // pred_region
    _
  $region13: #{tpu_custom_call.1} parent=0 // pred_fallthru
    _
  // Predicated region
  $region14: #{tpu_custom_call.1} parent=0 // pred_check
    _
  $region15: #{tpu_custom_call.1} parent=0 // pred_check_branch
    %27 = sbr.rel (0) target = $region17
  $region16: #{tpu_custom_call.1} parent=0 // pred_region
    _
  $region17: #{tpu_custom_call.1} parent=0 // pred_fallthru
    _
  // Predicated region
  $region18: #{tpu_custom_call.1} parent=0 // pred_check
    _
  $region19: #{tpu_custom_call.1} parent=0 // pred_check_branch
    %29 = sbr.rel (0) target = $region21
  $region20: #{tpu_custom_call.1} parent=0 // pred_region
    _
  $region21: #{tpu_custom_call.1} parent=0 // pred_fallthru
    _
  // Predicated region
  $region22: #{tpu_custom_call.1} parent=0 // pred_check
    _
  $region23: #{tpu_custom_call.1} parent=0 // pred_check_branch
    %31 = sbr.rel (0) target = $region25
  $region24: #{tpu_custom_call.1} parent=0 // pred_region
    _
  $region25: #{tpu_custom_call.1} parent=0 // pred_fallthru
    _
  // Predicated region
  $region26: #{tpu_custom_call.1} parent=0 // pred_check
    _
  $region27: #{tpu_custom_call.1} parent=0 // pred_check_branch
    %33 = sbr.rel (0) target = $region29
  $region28: #{tpu_custom_call.1} parent=0 // pred_region
    _
  $region29: #{tpu_custom_call.1} parent=0 // pred_fallthru
    _
  // Predicated region
  $region30: #{tpu_custom_call.1} parent=0 // pred_check
    _
  $region31: #{tpu_custom_call.1} parent=0 // pred_check_branch
    %35 = sbr.rel (0) target = $region33
  $region32: #{tpu_custom_call.1} parent=0 // pred_region
    _
  $region33: #{tpu_custom_call.1} parent=0 // pred_fallthru
    _
  // Predicated region
  $region34: #{tpu_custom_call.1} parent=0 // pred_check
    _
  $region35: #{tpu_custom_call.1} parent=0 // pred_check_branch
    %37 = sbr.rel (0) target = $region37
  $region36: #{tpu_custom_call.1} parent=0 // pred_region
    _
  $region37: #{tpu_custom_call.1} parent=0 // pred_fallthru
    _
  // Predicated region
  $region38: #{tpu_custom_call.1} parent=0 // pred_check
    _
  $region39: #{tpu_custom_call.1} parent=0 // pred_check_branch
    %39 = sbr.rel (0) target = $region41
  $region40: #{tpu_custom_call.1} parent=0 // pred_region
    _
  $region41: #{tpu_custom_call.1} parent=0 // pred_fallthru
    _
  // Predicated region
  $region42: #{tpu_custom_call.1} parent=0 // pred_check
    _
  $region43: #{tpu_custom_call.1} parent=0 // pred_check_branch
    %41 = sbr.rel (0) target = $region45
  $region44: #{tpu_custom_call.1} parent=0 // pred_region
    _
  $region45: #{tpu_custom_call.1} parent=0 // pred_fallthru
    _
  // Predicated region
  $region46: #{tpu_custom_call.1} parent=0 // pred_check
    _
  $region47: #{tpu_custom_call.1} parent=0 // pred_check_branch
    %43 = sbr.rel (0) target = $region49
  $region48: #{tpu_custom_call.1} parent=0 // pred_region
    _
  $region49: #{tpu_custom_call.1} parent=0 // pred_fallthru
    _
  %v45 = vld [vmem:[%s0] sm:$0xf]
  %v46 = vld [vmem:[%s0 + $0x4] sm:$0xf]
  %v47 = vld [vmem:[%s2] sm:$0xf]
  %v48 = vld [vmem:[%s2 + $0x4] sm:$0xf]
  %v49 = vld [vmem:[%s2 + $0x8] sm:$0xf]
  %v50 = vld [vmem:[%s2 + $0xc] sm:$0xf]
  %v51 = vld [vmem:[%s3] sm:$0x1]
  %v53 = vlaneseq
  %v54 = vshrl.u32 %v53, 7
  %v55 = vsub.s32 0, %v54
  %v56 = vrot.slane %v51, %v55
  %v60 = vunpack.c.l.b16 %v45
  %v61 = vunpack.c.l.b16 %v46
  %v62 = vpack.c.b16 %v61, %v60
  %v67 = vunpack.c.l.b16 %v47
  %v68 = vunpack.c.l.b16 %v48
  %v69 = vunpack.c.l.b16 %v49
  %v70 = vunpack.c.l.b16 %v50
  %v71 = vpack.c.b16 %v68, %v67
  %v72 = vpack.c.b16 %v70, %v69
  %vm75 = vcmask 261120
  %v77 = vsel %vm75, %v62, 0
  %79 = vmatprep.subr.bf16.mxu0 0
  %80 = vmatpush1.bf16.msra.mxu0 %v71
  %81 = vmatprep.subr.bf16.mxu0 0
  %82 = vmatpush1.bf16.msra.mxu0 %v72
  %83 = vmatprep.subr.bf16.mxu0 0
  %84 = vmatpush1.bf16.msra.mxu0 0
  %85 = vmatprep.subr.bf16.mxu0 0
  %86 = vmatpush1.bf16.msra.mxu0 0
  %87 = vmatprep.subr.bf16.mxu0 0
  %88 = vmatpush1.bf16.msra.mxu0 0
  %89 = vmatprep.subr.bf16.mxu0 0
  %90 = vmatpush1.bf16.msra.mxu0 0
  %91 = vmatprep.subr.bf16.mxu0 0
  %92 = vmatpush1.bf16.msra.mxu0 0
  %93 = vmatprep.subr.bf16.mxu0 0
  %94 = vmatpush1.bf16.msra.mxu0 0
  %95 = vmatprep.subr.bf16.mxu0 0
  %96 = vmatpush1.bf16.msra.mxu0 0
  %97 = vmatprep.subr.bf16.mxu0 0
  %98 = vmatpush1.bf16.msra.mxu0 0
  %99 = vmatprep.subr.bf16.mxu0 0
  %100 = vmatpush1.bf16.msra.mxu0 0
  %101 = vmatprep.subr.bf16.mxu0 0
  %102 = vmatpush1.bf16.msra.mxu0 0
  %103 = vmatprep.subr.bf16.mxu0 0
  %104 = vmatpush1.bf16.msra.mxu0 0
  %105 = vmatprep.subr.bf16.mxu0 0
  %106 = vmatpush1.bf16.msra.mxu0 0
  %107 = vmatprep.subr.bf16.mxu0 0
  %108 = vmatpush1.bf16.msra.mxu0 0
  %109 = vmatprep.subr.bf16.mxu0 0
  %110 = vmatpush1.bf16.msra.mxu0 0
  %111 = vmatprep.mubr.bf16.mxu0 0
  %112 = vmatmul.mubr.bf16.gmra.mrb[0].mxu0 %v77
  %v113 = vpop.f32.mrb[0].mxu0
  %v114 = vadd.f32 %v56, %v113
  %v115 = vpop.f32.mrb[0].mxu0
  %v116 = vpop.f32.mrb[0].mxu0
  %v117 = vadd.f32 %v56, %v116
  %v118 = vpop.f32.mrb[0].mxu0
  %119 = vdwg.mxu0
  %v120 = vsel %vm75, %v114, 0.0
  %121 = vadd.xlane.f32.xlu0 %v120
  %v122 = vpop.xlane.xlu0 %121
  %v123 = vsel %vm75, %v117, 0.0
  %124 = vadd.xlane.f32.xlu0 %v123
  %v125 = vpop.xlane.xlu0 %124
  %v126 = vrcp.pop 32.0
  %v127 = vmul.f32 %v122, %v126
  %v128 = vmul.f32 %v125, %v126
  %v129 = vsub.f32 %v114, %v127
  %v130 = vsub.f32 %v117, %v128
  %v131 = vmul.f32 %v129, %v129
  %v132 = vmul.f32 %v130, %v130
  %v133 = vsel %vm75, %v131, 0.0
  %134 = vadd.xlane.f32.xlu0 %v133
  %v135 = vpop.xlane.xlu0 %134
  %v136 = vsel %vm75, %v132, 0.0
  %137 = vadd.xlane.f32.xlu0 %v136
  %v138 = vpop.xlane.xlu0 %137
  %v139 = vmul.f32 %v135, %v126
  %v140 = vmul.f32 %v138, %v126
  %v141 = vadd.f32 %v139, 1e-05
  %v142 = vadd.f32 %v140, 1e-05
  %v143 = vrsqrt.pop %v141
  %v144 = vrsqrt.pop %v142
  %v145 = vmul.f32 %v129, %v143
  %v146 = vmul.f32 %v130, %v144
  %v147 = vld [vmem:[%s4] sm:$0x1]
  %v149 = vlaneseq
  %v150 = vshrl.u32 %v149, 7
  %v151 = vsub.s32 0, %v150
  %v152 = vrot.slane %v147, %v151
  %v154 = vmul.f32 %v145, %v152
  %v155 = vmul.f32 %v146, %v152
  %v156 = vld [vmem:[%s5] sm:$0x1]
  %v158 = vlaneseq
  %v159 = vshrl.u32 %v158, 7
  %v160 = vsub.s32 0, %v159
  %v161 = vrot.slane %v156, %v160
  %v163 = vadd.f32 %v154, %v161
  %v164 = vadd.f32 %v155, %v161
  %v165 = vmul.f32 %v163, 0.5
  %v166 = vmul.f32 %v164, 0.5
  %v167 = vmul.f32 %v163, 0.70710677
  %v168 = vmul.f32 %v164, 0.70710677
  %v169 = verf.f32.pop %v167
  %v170 = verf.f32.pop %v168
  %v171 = vadd.f32 %v169, 1.0
  %v172 = vadd.f32 %v170, 1.0
  %v173 = vmul.f32 %v165, %v171
  %v174 = vmul.f32 %v166, %v172
  %s175 = sld [smem:[#allocation2]]
  %v176 = vld [vmem:[%s6] sm:$0x1]
  %v178 = vlaneseq
  %v179 = vshrl.u32 %v178, 7
  %v180 = vsub.s32 0, %v179
  %v181 = vrot.slane %v176, %v180
  %v183 = vmul.f32 %v173, %v181
  %v184 = vmul.f32 %v174, %v181
  %v185 = vsel %vm75, %v183, 0.0
  %186 = vadd.xlane.f32.xlu0 %v185
  %v187 = vpop.xlane.xlu0 %186
  %v188 = vsel %vm75, %v184, 0.0
  %189 = vadd.xlane.f32.xlu0 %v188
  %v190 = vpop.xlane.xlu0 %189
  %v191 = vstv %s175
  %v192 = vadd.f32 %v187, %v191
  %v193 = vadd.f32 %v190, %v191
  %v194 = vld [vmem:[%s1] sm:$0xff]
  %v195 = vld [vmem:[%s1 + $0x8] sm:$0xff]
  %vm196 = vcmp.gt.f32.partialorder %v194, 0.0
  %vm197 = vcmp.gt.f32.partialorder %v195, 0.0
  %v198 = vsel %vm196, %v192, -1e+30
  %v199 = vsel %vm197, %v193, -1e+30
  %vm200 = vcmask 7168
  %v201 = vsel %vm200, %v198, -inf
  %v202 = vrot.slane %v201, 4
  %v203 = vmax.f32 %v201, %v202
  %v204 = vrot.slane %v203, 2
  %v205 = vmax.f32 %v203, %v204
  %v206 = vrot.slane %v205, 1
  %v207 = vmax.f32 %v205, %v206
  %v208 = vsel %vm200, %v199, -inf
  %v209 = vrot.slane %v208, 4
  %v210 = vmax.f32 %v208, %v209
  %v211 = vrot.slane %v210, 2
  %v212 = vmax.f32 %v210, %v211
  %v213 = vrot.slane %v212, 1
  %v214 = vmax.f32 %v212, %v213
  %v215 = vsub.f32 %v198, %v207
  %v216 = vsub.f32 %v199, %v214
  %v217 = vmul.f32 %v215, 1.442695
  %v218 = vpow.pop %v217
  %v219 = vmul.f32 %v216, 1.442695
  %v220 = vpow.pop %v219
  %v221 = vsel %vm200, %v218, 0.0
  %v222 = vrot.slane %v221, 4
  %v223 = vadd.f32 %v221, %v222
  %v224 = vrot.slane %v223, 2
  %v225 = vadd.f32 %v223, %v224
  %v226 = vrot.slane %v225, 1
  %v227 = vadd.f32 %v225, %v226
  %v228 = vsel %vm200, %v220, 0.0
  %v229 = vrot.slane %v228, 4
  %v230 = vadd.f32 %v228, %v229
  %v231 = vrot.slane %v230, 2
  %v232 = vadd.f32 %v230, %v231
  %v233 = vrot.slane %v232, 1
  %v234 = vadd.f32 %v232, %v233
  %v235 = vrcp.pop %v227
  %v236 = vmul.f32 %v218, %v235
  %v237 = vrcp.pop %v234
  %v238 = vmul.f32 %v220, %v237
  %v239 = vunpack.c.l.bf16 %v45
  %v240 = vunpack.c.l.bf16 %v46
  %242 = vset.pattern.permute.xlu0 0
  %243 = vperm.xlu0 %242, %v236
  %v244 = vpop.permute.xlu0 %243
  %247 = vset.pattern.permute.xlu0 0
  %248 = vperm.xlu0 %247, %v238
  %v249 = vpop.permute.xlu0 %248
  %v251 = vmul.f32 %v244, %v239
  %v252 = vmul.f32 %v249, %v240
  %v253 = vsel %vm75, %v251, 0.0
  %v254 = vrot.slane %v253, 4
  %v255 = vadd.f32 %v253, %v254
  %v256 = vrot.slane %v255, 2
  %v257 = vadd.f32 %v255, %v256
  %v258 = vrot.slane %v257, 1
  %v259 = vadd.f32 %v257, %v258
  %v260 = vsel %vm75, %v252, 0.0
  %v261 = vrot.slane %v260, 4
  %v262 = vadd.f32 %v260, %v261
  %v263 = vrot.slane %v262, 2
  %v264 = vadd.f32 %v262, %v263
  %v265 = vrot.slane %v264, 1
  %v266 = vadd.f32 %v264, %v265
  %vm269 = vcmask 1041409
  %v270 = vsel %vm269, %v266, %v259
  %vm272 = vcmask 254976
  %v273 = vsel %vm272, %v270, 0.0
  %274 = vadd.xlane.f32.xlu0 %v273
  %v275 = vpop.xlane.xlu0 %274
  %v276 = vmul.f32 %v275, %v126
  %v278 = vrot.slane %v276, 1
  %v281 = vsub.f32 %v259, %v276
  %v282 = vsub.f32 %v266, %v278
  %v283 = vmul.f32 %v281, %v281
  %v284 = vmul.f32 %v282, %v282
  %v287 = vrot.slane %v284, 7
  %v288 = vsel %vm269, %v287, %v283
  %v290 = vsel %vm272, %v288, 0.0
  %291 = vadd.xlane.f32.xlu0 %v290
  %v292 = vpop.xlane.xlu0 %291
  %v293 = vmul.f32 %v292, %v126
  %v294 = vadd.f32 %v293, 1e-05
  %v295 = vrsqrt.pop %v294
  %v297 = vrot.slane %v295, 1
  %v300 = vmul.f32 %v281, %v295
  %v301 = vmul.f32 %v282, %v297
  %v302 = vld [vmem:[%s8] sm:$0x1]
  %v304 = vlaneseq
  %v305 = vshrl.u32 %v304, 7
  %v306 = vsub.s32 0, %v305
  %v307 = vrot.slane %v302, %v306
  %v309 = vmul.f32 %v300, %v307
  %v310 = vmul.f32 %v301, %v307
  %v311 = vld [vmem:[%s9] sm:$0x1]
  %v313 = vlaneseq
  %v314 = vshrl.u32 %v313, 7
  %v315 = vsub.s32 0, %v314
  %v316 = vrot.slane %v311, %v315
  %v318 = vadd.f32 %v309, %v316
  %v319 = vadd.f32 %v310, %v316
  %v320 = vld [vmem:[%s10] sm:$0x1]
  %v321 = vmul.f32 %v318, %v320
  %v322 = vmul.f32 %v319, %v320
  %vm323 = vcmask 253952
  %v324 = vsel %vm323, %v321, 0.0
  %325 = vadd.xlane.f32.xlu0 %v324
  %v326 = vpop.xlane.xlu0 %325
  %v327 = vsel %vm323, %v322, 0.0
  %328 = vadd.xlane.f32.xlu0 %v327
  %v329 = vpop.xlane.xlu0 %328
  %v330 = vld [vmem:[#allocation3] sm:$0x1]
  %v332 = vlaneseq
  %v333 = vshrl.u32 %v332, 7
  %v334 = vsub.s32 0, %v333
  %v335 = vrot.slane %v330, %v334
  %337 = vbcast.lane.b32.xlu0 %v335, 256
  %v338 = vpop.permute.xlu0 %337
  %v340 = vadd.f32 %v326, %v338
  %v341 = vadd.f32 %v329, %v338
  %v344 = vrot.slane %v341, 7
  %v345 = vsel %vm269, %v344, %v340
  %vm347 = vcmask 1024
  %348 = vst.msk [vmem:[%s12] sm:$0x3] %vm347, %v345
  // Predicated region
  $region50: #{tpu_custom_call.1} parent=0 // pred_check
    _
  $region51: #{tpu_custom_call.1} parent=0 // pred_check_branch
    %350 = sbr.rel (0) target = $region53
  $region52: #{tpu_custom_call.1} parent=0 // pred_region
    _
  $region53: #{tpu_custom_call.1} parent=0 // pred_fallthru
    _
  // Predicated region
  $region54: #{tpu_custom_call.1} parent=0 // pred_check
    _
  $region55: #{tpu_custom_call.1} parent=0 // pred_check_branch
    %352 = sbr.rel (0) target = $region57
  $region56: #{tpu_custom_call.1} parent=0 // pred_region
    _
  $region57: #{tpu_custom_call.1} parent=0 // pred_fallthru
    _

</llo_original>
